<compile_context>
chip_gen: v5e
topology: v5e:2x2
jax: 0.10.0
libtpu: 0.0.40
codegen_flags: <defaults>
</compile_context>

<pallas_src>
import functools

import jax
import jax.numpy as jnp
from jax.experimental import pallas as pl
from jax.experimental.pallas import tpu as pltpu


_IN, _HID, _OUT = 2, 16, 2

# Packed parameter slab (single [16, 37] f32 operand, resident in VMEM):
#   cols [0:2)    rows [0:16) -> W1  [16, 2]
#   col   2       rows [0:16) -> b1  [16]
#   cols [3:19)   rows [0:16) -> W2  [16, 16]
#   col   19      rows [0:16) -> b2  [16]
#   cols [20:36)  rows [0:2)  -> W3  [2, 16]
#   col   36      rows [0:2)  -> b3  [2]
_W1_OFF = 0
_B1_OFF = _W1_OFF + _IN          # 2
_W2_OFF = _B1_OFF + 1            # 3
_B2_OFF = _W2_OFF + _HID         # 19
_W3_OFF = _B2_OFF + 1            # 20
_B3_OFF = _W3_OFF + _HID         # 36
_SLAB_COLS = _B3_OFF + 1         # 37
_SLAB_ROWS = _HID                # 16


def _leaky_relu(x, slope=0.2):
    # max(x, 0.2*x) == LeakyReLU(0.2) (one mul + one max on the VPU).
    return jnp.maximum(x, slope * x)


def _dense_fma(w, b, x):
    """y = w @ x + b via unrolled VPU broadcast-FMAs.

    w: [out, in], b: [out, 1], x: [in, n]  ->  [out, n]
    `in` is a tiny compile-time constant (2 or 16), so the loop fully unrolls.
    """
    out_f, in_f = w.shape
    n = x.shape[1]
    acc = jnp.broadcast_to(b, (out_f, n))
    for k in range(in_f):
        acc = acc + w[:, k:k + 1] * x[k:k + 1, :]
    return acc


def generator_kernel(slab_ref, x_ref, o_ref):
    slab = slab_ref[...]                       # [16, 37] f32, resident
    x = x_ref[...].astype(jnp.float32)         # [2, bn]  feature-major tile

    w1 = slab[:, _W1_OFF:_W1_OFF + _IN]        # [16, 2]
    b1 = slab[:, _B1_OFF:_B1_OFF + 1]          # [16, 1]
    w2 = slab[:, _W2_OFF:_W2_OFF + _HID]       # [16, 16]
    b2 = slab[:, _B2_OFF:_B2_OFF + 1]          # [16, 1]
    w3 = slab[0:_OUT, _W3_OFF:_W3_OFF + _HID]  # [2, 16]
    b3 = slab[0:_OUT, _B3_OFF:_B3_OFF + 1]     # [2, 1]

    h1 = _leaky_relu(_dense_fma(w1, b1, x))    # [16, bn]
    h2 = _leaky_relu(_dense_fma(w2, b2, h1))   # [16, bn]
    out = _dense_fma(w3, b3, h2)               # [2, bn]

    o_ref[...] = out.astype(o_ref.dtype)


def pack_params(params):
    """Pack PyTorch-layout params ([out, in] weights, [out] biases) into one slab."""
    slab = jnp.zeros((_SLAB_ROWS, _SLAB_COLS), jnp.float32)
    slab = slab.at[:, _W1_OFF:_W1_OFF + _IN].set(params["w1"])
    slab = slab.at[:, _B1_OFF].set(params["b1"])
    slab = slab.at[:, _W2_OFF:_W2_OFF + _HID].set(params["w2"])
    slab = slab.at[:, _B2_OFF].set(params["b2"])
    slab = slab.at[0:_OUT, _W3_OFF:_W3_OFF + _HID].set(params["w3"])
    slab = slab.at[0:_OUT, _B3_OFF].set(params["b3"])
    return slab


def _round_up(a, b):
    return (a + b - 1) // b * b


def generator_forward(x, params, *, block_n=2048):
    """x: [N, 2] float32; params in PyTorch layout. Returns [N, 2]."""
    n = x.shape[0]
    slab = pack_params(params)

    # Lane-dense layout: [features, N].
    x_t = jnp.transpose(x).astype(jnp.float32)          # [2, N]

    bn = min(block_n, _round_up(max(n, 1), 128))         # tile (multiple of 128 lanes)
    n_pad = _round_up(n, bn)
    if n_pad != n:
        x_t = jnp.pad(x_t, ((0, 0), (0, n_pad - n)))

    out_t = pl.pallas_call(
        generator_kernel,
        out_shape=jax.ShapeDtypeStruct((_OUT, n_pad), x.dtype),
        grid=(n_pad // bn,),
        in_specs=[
            # Packed weights/biases: constant block -> stays resident in VMEM.
            pl.BlockSpec((_SLAB_ROWS, _SLAB_COLS), lambda i: (0, 0)),
            # Activations tiled along the lane (batch) axis, double-buffered.
            pl.BlockSpec((_IN, bn), lambda i: (0, i)),
        ],
        out_specs=pl.BlockSpec((_OUT, bn), lambda i: (0, i)),
        compiler_params=pltpu.CompilerParams(
            dimension_semantics=("parallel",),   # shards across TCs on v7x
        ),
    )(slab, x_t)

    return jnp.transpose(out_t[:, :n])                   # back to [N, 2]


def init_params(key):
    """PyTorch-style default Linear init: U(-1/sqrt(fan_in), 1/sqrt(fan_in))."""
    def linear(key, fan_in, fan_out):
        kw, kb = jax.random.split(key)
        bound = 1.0 / jnp.sqrt(float(fan_in))
        w = jax.random.uniform(kw, (fan_out, fan_in), jnp.float32, -bound, bound)
        b = jax.random.uniform(kb, (fan_out,), jnp.float32, -bound, bound)
        return w, b

    k1, k2, k3 = jax.random.split(key, 3)
    w1, b1 = linear(k1, _IN, _HID)
    w2, b2 = linear(k2, _HID, _HID)
    w3, b3 = linear(k3, _HID, _OUT)
    return {"w1": w1, "b1": b1, "w2": w2, "b2": b2, "w3": w3, "b3": b3}


def reference_forward(x, p):
    h1 = _leaky_relu(x @ p["w1"].T + p["b1"])
    h2 = _leaky_relu(h1 @ p["w2"].T + p["b2"])
    return h2 @ p["w3"].T + p["b3"]


if __name__ == "__main__":
    key = jax.random.PRNGKey(0)
    k_param, k_x = jax.random.split(key)

    params = init_params(k_param)
    x = jax.random.normal(k_x, (8, 2), jnp.float32)   # batch=8, in_features=2

    out = generator_forward(x, params)
    out = jax.block_until_ready(out)

    ref = reference_forward(x, params)
    assert out.shape == (8, 2)
    assert jnp.allclose(out, ref, atol=1e-5, rtol=1e-5), float(jnp.max(jnp.abs(out - ref)))

    print("KERNEL_OK")
</pallas_src>

<mosaic_0001>
module attributes {stable_mosaic.version = 11 : i64} {
  func.func @generator_kernel(%arg0: i32, %arg1: memref<16x37xf32, #tpu.memory_space<vmem>>, %arg2: memref<2x128xf32, #tpu.memory_space<vmem>>, %arg3: memref<2x128xf32, #tpu.memory_space<vmem>>) attributes {dimension_semantics = [#tpu.dimension_semantics<parallel>], iteration_bounds = array<i64: 1>, scalar_prefetch = 0 : i64, scratch_operands = 0 : i64, tpu.core_type = #tpu.core_type<tc>, window_params = [{pipeline_mode = #tpu.pipeline_mode<synchronous>, transform_indices = @transform_0, window_bounds = array<i64: 16, 37>}, {transform_indices = @transform_1, window_bounds = array<i64: 2, 128>}, {transform_indices = @transform_2, window_bounds = array<i64: 2, 128>}]} {
    %c0 = arith.constant 0 : index
    %c0_0 = arith.constant 0 : index
    %0 = vector.load %arg1[%c0, %c0_0] : memref<16x37xf32, #tpu.memory_space<vmem>>, vector<16x37xf32>
    %c0_1 = arith.constant 0 : index
    %c0_2 = arith.constant 0 : index
    %1 = vector.load %arg2[%c0_1, %c0_2] : memref<2x128xf32, #tpu.memory_space<vmem>>, vector<2x128xf32>
    %2 = vector.extract_strided_slice %0 {offsets = [0, 0], sizes = [16, 2], strides = [1, 1]} : vector<16x37xf32> to vector<16x2xf32>
    %3 = vector.extract_strided_slice %0 {offsets = [0, 2], sizes = [16, 1], strides = [1, 1]} : vector<16x37xf32> to vector<16x1xf32>
    %4 = vector.extract_strided_slice %0 {offsets = [0, 3], sizes = [16, 16], strides = [1, 1]} : vector<16x37xf32> to vector<16x16xf32>
    %5 = vector.extract_strided_slice %0 {offsets = [0, 19], sizes = [16, 1], strides = [1, 1]} : vector<16x37xf32> to vector<16x1xf32>
    %6 = vector.extract_strided_slice %0 {offsets = [0, 20], sizes = [2, 16], strides = [1, 1]} : vector<16x37xf32> to vector<2x16xf32>
    %7 = vector.extract_strided_slice %0 {offsets = [0, 36], sizes = [2, 1], strides = [1, 1]} : vector<16x37xf32> to vector<2x1xf32>
    %8 = vector.shape_cast %3 : vector<16x1xf32> to vector<16x1xf32>
    %9 = vector.broadcast %8 : vector<16x1xf32> to vector<16x128xf32>
    %10 = vector.extract_strided_slice %2 {offsets = [0, 0], sizes = [16, 1], strides = [1, 1]} : vector<16x2xf32> to vector<16x1xf32>
    %11 = vector.extract_strided_slice %1 {offsets = [0, 0], sizes = [1, 128], strides = [1, 1]} : vector<2x128xf32> to vector<1x128xf32>
    %12 = vector.broadcast %10 : vector<16x1xf32> to vector<16x128xf32>
    %13 = vector.broadcast %11 : vector<1x128xf32> to vector<16x128xf32>
    %14 = arith.mulf %12, %13 : vector<16x128xf32>
    %15 = arith.addf %9, %14 : vector<16x128xf32>
    %16 = vector.extract_strided_slice %2 {offsets = [0, 1], sizes = [16, 1], strides = [1, 1]} : vector<16x2xf32> to vector<16x1xf32>
    %17 = vector.extract_strided_slice %1 {offsets = [1, 0], sizes = [1, 128], strides = [1, 1]} : vector<2x128xf32> to vector<1x128xf32>
    %18 = vector.broadcast %16 : vector<16x1xf32> to vector<16x128xf32>
    %19 = vector.broadcast %17 : vector<1x128xf32> to vector<16x128xf32>
    %20 = arith.mulf %18, %19 : vector<16x128xf32>
    %21 = arith.addf %15, %20 : vector<16x128xf32>
    %cst = arith.constant 2.000000e-01 : f32
    %22 = vector.broadcast %cst : f32 to vector<16x128xf32>
    %23 = arith.mulf %22, %21 : vector<16x128xf32>
    %24 = arith.maximumf %21, %23 : vector<16x128xf32>
    %25 = vector.shape_cast %5 : vector<16x1xf32> to vector<16x1xf32>
    %26 = vector.broadcast %25 : vector<16x1xf32> to vector<16x128xf32>
    %27 = vector.extract_strided_slice %4 {offsets = [0, 0], sizes = [16, 1], strides = [1, 1]} : vector<16x16xf32> to vector<16x1xf32>
    %28 = vector.extract_strided_slice %24 {offsets = [0, 0], sizes = [1, 128], strides = [1, 1]} : vector<16x128xf32> to vector<1x128xf32>
    %29 = vector.broadcast %27 : vector<16x1xf32> to vector<16x128xf32>
    %30 = vector.broadcast %28 : vector<1x128xf32> to vector<16x128xf32>
    %31 = arith.mulf %29, %30 : vector<16x128xf32>
    %32 = arith.addf %26, %31 : vector<16x128xf32>
    %33 = vector.extract_strided_slice %4 {offsets = [0, 1], sizes = [16, 1], strides = [1, 1]} : vector<16x16xf32> to vector<16x1xf32>
    %34 = vector.extract_strided_slice %24 {offsets = [1, 0], sizes = [1, 128], strides = [1, 1]} : vector<16x128xf32> to vector<1x128xf32>
    %35 = vector.broadcast %33 : vector<16x1xf32> to vector<16x128xf32>
    %36 = vector.broadcast %34 : vector<1x128xf32> to vector<16x128xf32>
    %37 = arith.mulf %35, %36 : vector<16x128xf32>
    %38 = arith.addf %32, %37 : vector<16x128xf32>
    %39 = vector.extract_strided_slice %4 {offsets = [0, 2], sizes = [16, 1], strides = [1, 1]} : vector<16x16xf32> to vector<16x1xf32>
    %40 = vector.extract_strided_slice %24 {offsets = [2, 0], sizes = [1, 128], strides = [1, 1]} : vector<16x128xf32> to vector<1x128xf32>
    %41 = vector.broadcast %39 : vector<16x1xf32> to vector<16x128xf32>
    %42 = vector.broadcast %40 : vector<1x128xf32> to vector<16x128xf32>
    %43 = arith.mulf %41, %42 : vector<16x128xf32>
    %44 = arith.addf %38, %43 : vector<16x128xf32>
    %45 = vector.extract_strided_slice %4 {offsets = [0, 3], sizes = [16, 1], strides = [1, 1]} : vector<16x16xf32> to vector<16x1xf32>
    %46 = vector.extract_strided_slice %24 {offsets = [3, 0], sizes = [1, 128], strides = [1, 1]} : vector<16x128xf32> to vector<1x128xf32>
    %47 = vector.broadcast %45 : vector<16x1xf32> to vector<16x128xf32>
    %48 = vector.broadcast %46 : vector<1x128xf32> to vector<16x128xf32>
    %49 = arith.mulf %47, %48 : vector<16x128xf32>
    %50 = arith.addf %44, %49 : vector<16x128xf32>
    %51 = vector.extract_strided_slice %4 {offsets = [0, 4], sizes = [16, 1], strides = [1, 1]} : vector<16x16xf32> to vector<16x1xf32>
    %52 = vector.extract_strided_slice %24 {offsets = [4, 0], sizes = [1, 128], strides = [1, 1]} : vector<16x128xf32> to vector<1x128xf32>
    %53 = vector.broadcast %51 : vector<16x1xf32> to vector<16x128xf32>
    %54 = vector.broadcast %52 : vector<1x128xf32> to vector<16x128xf32>
    %55 = arith.mulf %53, %54 : vector<16x128xf32>
    %56 = arith.addf %50, %55 : vector<16x128xf32>
    %57 = vector.extract_strided_slice %4 {offsets = [0, 5], sizes = [16, 1], strides = [1, 1]} : vector<16x16xf32> to vector<16x1xf32>
    %58 = vector.extract_strided_slice %24 {offsets = [5, 0], sizes = [1, 128], strides = [1, 1]} : vector<16x128xf32> to vector<1x128xf32>
    %59 = vector.broadcast %57 : vector<16x1xf32> to vector<16x128xf32>
    %60 = vector.broadcast %58 : vector<1x128xf32> to vector<16x128xf32>
    %61 = arith.mulf %59, %60 : vector<16x128xf32>
    %62 = arith.addf %56, %61 : vector<16x128xf32>
    %63 = vector.extract_strided_slice %4 {offsets = [0, 6], sizes = [16, 1], strides = [1, 1]} : vector<16x16xf32> to vector<16x1xf32>
    %64 = vector.extract_strided_slice %24 {offsets = [6, 0], sizes = [1, 128], strides = [1, 1]} : vector<16x128xf32> to vector<1x128xf32>
    %65 = vector.broadcast %63 : vector<16x1xf32> to vector<16x128xf32>
    %66 = vector.broadcast %64 : vector<1x128xf32> to vector<16x128xf32>
    %67 = arith.mulf %65, %66 : vector<16x128xf32>
    %68 = arith.addf %62, %67 : vector<16x128xf32>
    %69 = vector.extract_strided_slice %4 {offsets = [0, 7], sizes = [16, 1], strides = [1, 1]} : vector<16x16xf32> to vector<16x1xf32>
    %70 = vector.extract_strided_slice %24 {offsets = [7, 0], sizes = [1, 128], strides = [1, 1]} : vector<16x128xf32> to vector<1x128xf32>
    %71 = vector.broadcast %69 : vector<16x1xf32> to vector<16x128xf32>
    %72 = vector.broadcast %70 : vector<1x128xf32> to vector<16x128xf32>
    %73 = arith.mulf %71, %72 : vector<16x128xf32>
    %74 = arith.addf %68, %73 : vector<16x128xf32>
    %75 = vector.extract_strided_slice %4 {offsets = [0, 8], sizes = [16, 1], strides = [1, 1]} : vector<16x16xf32> to vector<16x1xf32>
    %76 = vector.extract_strided_slice %24 {offsets = [8, 0], sizes = [1, 128], strides = [1, 1]} : vector<16x128xf32> to vector<1x128xf32>
    %77 = vector.broadcast %75 : vector<16x1xf32> to vector<16x128xf32>
    %78 = vector.broadcast %76 : vector<1x128xf32> to vector<16x128xf32>
    %79 = arith.mulf %77, %78 : vector<16x128xf32>
    %80 = arith.addf %74, %79 : vector<16x128xf32>
    %81 = vector.extract_strided_slice %4 {offsets = [0, 9], sizes = [16, 1], strides = [1, 1]} : vector<16x16xf32> to vector<16x1xf32>
    %82 = vector.extract_strided_slice %24 {offsets = [9, 0], sizes = [1, 128], strides = [1, 1]} : vector<16x128xf32> to vector<1x128xf32>
    %83 = vector.broadcast %81 : vector<16x1xf32> to vector<16x128xf32>
    %84 = vector.broadcast %82 : vector<1x128xf32> to vector<16x128xf32>
    %85 = arith.mulf %83, %84 : vector<16x128xf32>
    %86 = arith.addf %80, %85 : vector<16x128xf32>
    %87 = vector.extract_strided_slice %4 {offsets = [0, 10], sizes = [16, 1], strides = [1, 1]} : vector<16x16xf32> to vector<16x1xf32>
    %88 = vector.extract_strided_slice %24 {offsets = [10, 0], sizes = [1, 128], strides = [1, 1]} : vector<16x128xf32> to vector<1x128xf32>
    %89 = vector.broadcast %87 : vector<16x1xf32> to vector<16x128xf32>
    %90 = vector.broadcast %88 : vector<1x128xf32> to vector<16x128xf32>
    %91 = arith.mulf %89, %90 : vector<16x128xf32>
    %92 = arith.addf %86, %91 : vector<16x128xf32>
    %93 = vector.extract_strided_slice %4 {offsets = [0, 11], sizes = [16, 1], strides = [1, 1]} : vector<16x16xf32> to vector<16x1xf32>
    %94 = vector.extract_strided_slice %24 {offsets = [11, 0], sizes = [1, 128], strides = [1, 1]} : vector<16x128xf32> to vector<1x128xf32>
    %95 = vector.broadcast %93 : vector<16x1xf32> to vector<16x128xf32>
    %96 = vector.broadcast %94 : vector<1x128xf32> to vector<16x128xf32>
    %97 = arith.mulf %95, %96 : vector<16x128xf32>
    %98 = arith.addf %92, %97 : vector<16x128xf32>
    %99 = vector.extract_strided_slice %4 {offsets = [0, 12], sizes = [16, 1], strides = [1, 1]} : vector<16x16xf32> to vector<16x1xf32>
    %100 = vector.extract_strided_slice %24 {offsets = [12, 0], sizes = [1, 128], strides = [1, 1]} : vector<16x128xf32> to vector<1x128xf32>
    %101 = vector.broadcast %99 : vector<16x1xf32> to vector<16x128xf32>
    %102 = vector.broadcast %100 : vector<1x128xf32> to vector<16x128xf32>
    %103 = arith.mulf %101, %102 : vector<16x128xf32>
    %104 = arith.addf %98, %103 : vector<16x128xf32>
    %105 = vector.extract_strided_slice %4 {offsets = [0, 13], sizes = [16, 1], strides = [1, 1]} : vector<16x16xf32> to vector<16x1xf32>
    %106 = vector.extract_strided_slice %24 {offsets = [13, 0], sizes = [1, 128], strides = [1, 1]} : vector<16x128xf32> to vector<1x128xf32>
    %107 = vector.broadcast %105 : vector<16x1xf32> to vector<16x128xf32>
    %108 = vector.broadcast %106 : vector<1x128xf32> to vector<16x128xf32>
    %109 = arith.mulf %107, %108 : vector<16x128xf32>
    %110 = arith.addf %104, %109 : vector<16x128xf32>
    %111 = vector.extract_strided_slice %4 {offsets = [0, 14], sizes = [16, 1], strides = [1, 1]} : vector<16x16xf32> to vector<16x1xf32>
    %112 = vector.extract_strided_slice %24 {offsets = [14, 0], sizes = [1, 128], strides = [1, 1]} : vector<16x128xf32> to vector<1x128xf32>
    %113 = vector.broadcast %111 : vector<16x1xf32> to vector<16x128xf32>
    %114 = vector.broadcast %112 : vector<1x128xf32> to vector<16x128xf32>
    %115 = arith.mulf %113, %114 : vector<16x128xf32>
    %116 = arith.addf %110, %115 : vector<16x128xf32>
    %117 = vector.extract_strided_slice %4 {offsets = [0, 15], sizes = [16, 1], strides = [1, 1]} : vector<16x16xf32> to vector<16x1xf32>
    %118 = vector.extract_strided_slice %24 {offsets = [15, 0], sizes = [1, 128], strides = [1, 1]} : vector<16x128xf32> to vector<1x128xf32>
    %119 = vector.broadcast %117 : vector<16x1xf32> to vector<16x128xf32>
    %120 = vector.broadcast %118 : vector<1x128xf32> to vector<16x128xf32>
    %121 = arith.mulf %119, %120 : vector<16x128xf32>
    %122 = arith.addf %116, %121 : vector<16x128xf32>
    %cst_3 = arith.constant 2.000000e-01 : f32
    %123 = vector.broadcast %cst_3 : f32 to vector<16x128xf32>
    %124 = arith.mulf %123, %122 : vector<16x128xf32>
    %125 = arith.maximumf %122, %124 : vector<16x128xf32>
    %126 = vector.shape_cast %7 : vector<2x1xf32> to vector<2x1xf32>
    %127 = vector.broadcast %126 : vector<2x1xf32> to vector<2x128xf32>
    %128 = vector.extract_strided_slice %6 {offsets = [0, 0], sizes = [2, 1], strides = [1, 1]} : vector<2x16xf32> to vector<2x1xf32>
    %129 = vector.extract_strided_slice %125 {offsets = [0, 0], sizes = [1, 128], strides = [1, 1]} : vector<16x128xf32> to vector<1x128xf32>
    %130 = vector.broadcast %128 : vector<2x1xf32> to vector<2x128xf32>
    %131 = vector.broadcast %129 : vector<1x128xf32> to vector<2x128xf32>
    %132 = arith.mulf %130, %131 : vector<2x128xf32>
    %133 = arith.addf %127, %132 : vector<2x128xf32>
    %134 = vector.extract_strided_slice %6 {offsets = [0, 1], sizes = [2, 1], strides = [1, 1]} : vector<2x16xf32> to vector<2x1xf32>
    %135 = vector.extract_strided_slice %125 {offsets = [1, 0], sizes = [1, 128], strides = [1, 1]} : vector<16x128xf32> to vector<1x128xf32>
    %136 = vector.broadcast %134 : vector<2x1xf32> to vector<2x128xf32>
    %137 = vector.broadcast %135 : vector<1x128xf32> to vector<2x128xf32>
    %138 = arith.mulf %136, %137 : vector<2x128xf32>
    %139 = arith.addf %133, %138 : vector<2x128xf32>
    %140 = vector.extract_strided_slice %6 {offsets = [0, 2], sizes = [2, 1], strides = [1, 1]} : vector<2x16xf32> to vector<2x1xf32>
    %141 = vector.extract_strided_slice %125 {offsets = [2, 0], sizes = [1, 128], strides = [1, 1]} : vector<16x128xf32> to vector<1x128xf32>
    %142 = vector.broadcast %140 : vector<2x1xf32> to vector<2x128xf32>
    %143 = vector.broadcast %141 : vector<1x128xf32> to vector<2x128xf32>
    %144 = arith.mulf %142, %143 : vector<2x128xf32>
    %145 = arith.addf %139, %144 : vector<2x128xf32>
    %146 = vector.extract_strided_slice %6 {offsets = [0, 3], sizes = [2, 1], strides = [1, 1]} : vector<2x16xf32> to vector<2x1xf32>
    %147 = vector.extract_strided_slice %125 {offsets = [3, 0], sizes = [1, 128], strides = [1, 1]} : vector<16x128xf32> to vector<1x128xf32>
    %148 = vector.broadcast %146 : vector<2x1xf32> to vector<2x128xf32>
    %149 = vector.broadcast %147 : vector<1x128xf32> to vector<2x128xf32>
    %150 = arith.mulf %148, %149 : vector<2x128xf32>
    %151 = arith.addf %145, %150 : vector<2x128xf32>
    %152 = vector.extract_strided_slice %6 {offsets = [0, 4], sizes = [2, 1], strides = [1, 1]} : vector<2x16xf32> to vector<2x1xf32>
    %153 = vector.extract_strided_slice %125 {offsets = [4, 0], sizes = [1, 128], strides = [1, 1]} : vector<16x128xf32> to vector<1x128xf32>
    %154 = vector.broadcast %152 : vector<2x1xf32> to vector<2x128xf32>
    %155 = vector.broadcast %153 : vector<1x128xf32> to vector<2x128xf32>
    %156 = arith.mulf %154, %155 : vector<2x128xf32>
    %157 = arith.addf %151, %156 : vector<2x128xf32>
    %158 = vector.extract_strided_slice %6 {offsets = [0, 5], sizes = [2, 1], strides = [1, 1]} : vector<2x16xf32> to vector<2x1xf32>
    %159 = vector.extract_strided_slice %125 {offsets = [5, 0], sizes = [1, 128], strides = [1, 1]} : vector<16x128xf32> to vector<1x128xf32>
    %160 = vector.broadcast %158 : vector<2x1xf32> to vector<2x128xf32>
    %161 = vector.broadcast %159 : vector<1x128xf32> to vector<2x128xf32>
    %162 = arith.mulf %160, %161 : vector<2x128xf32>
    %163 = arith.addf %157, %162 : vector<2x128xf32>
    %164 = vector.extract_strided_slice %6 {offsets = [0, 6], sizes = [2, 1], strides = [1, 1]} : vector<2x16xf32> to vector<2x1xf32>
    %165 = vector.extract_strided_slice %125 {offsets = [6, 0], sizes = [1, 128], strides = [1, 1]} : vector<16x128xf32> to vector<1x128xf32>
    %166 = vector.broadcast %164 : vector<2x1xf32> to vector<2x128xf32>
    %167 = vector.broadcast %165 : vector<1x128xf32> to vector<2x128xf32>
    %168 = arith.mulf %166, %167 : vector<2x128xf32>
    %169 = arith.addf %163, %168 : vector<2x128xf32>
    %170 = vector.extract_strided_slice %6 {offsets = [0, 7], sizes = [2, 1], strides = [1, 1]} : vector<2x16xf32> to vector<2x1xf32>
    %171 = vector.extract_strided_slice %125 {offsets = [7, 0], sizes = [1, 128], strides = [1, 1]} : vector<16x128xf32> to vector<1x128xf32>
    %172 = vector.broadcast %170 : vector<2x1xf32> to vector<2x128xf32>
    %173 = vector.broadcast %171 : vector<1x128xf32> to vector<2x128xf32>
    %174 = arith.mulf %172, %173 : vector<2x128xf32>
    %175 = arith.addf %169, %174 : vector<2x128xf32>
    %176 = vector.extract_strided_slice %6 {offsets = [0, 8], sizes = [2, 1], strides = [1, 1]} : vector<2x16xf32> to vector<2x1xf32>
    %177 = vector.extract_strided_slice %125 {offsets = [8, 0], sizes = [1, 128], strides = [1, 1]} : vector<16x128xf32> to vector<1x128xf32>
    %178 = vector.broadcast %176 : vector<2x1xf32> to vector<2x128xf32>
    %179 = vector.broadcast %177 : vector<1x128xf32> to vector<2x128xf32>
    %180 = arith.mulf %178, %179 : vector<2x128xf32>
    %181 = arith.addf %175, %180 : vector<2x128xf32>
    %182 = vector.extract_strided_slice %6 {offsets = [0, 9], sizes = [2, 1], strides = [1, 1]} : vector<2x16xf32> to vector<2x1xf32>
    %183 = vector.extract_strided_slice %125 {offsets = [9, 0], sizes = [1, 128], strides = [1, 1]} : vector<16x128xf32> to vector<1x128xf32>
    %184 = vector.broadcast %182 : vector<2x1xf32> to vector<2x128xf32>
    %185 = vector.broadcast %183 : vector<1x128xf32> to vector<2x128xf32>
    %186 = arith.mulf %184, %185 : vector<2x128xf32>
    %187 = arith.addf %181, %186 : vector<2x128xf32>
    %188 = vector.extract_strided_slice %6 {offsets = [0, 10], sizes = [2, 1], strides = [1, 1]} : vector<2x16xf32> to vector<2x1xf32>
    %189 = vector.extract_strided_slice %125 {offsets = [10, 0], sizes = [1, 128], strides = [1, 1]} : vector<16x128xf32> to vector<1x128xf32>
    %190 = vector.broadcast %188 : vector<2x1xf32> to vector<2x128xf32>
    %191 = vector.broadcast %189 : vector<1x128xf32> to vector<2x128xf32>
    %192 = arith.mulf %190, %191 : vector<2x128xf32>
    %193 = arith.addf %187, %192 : vector<2x128xf32>
    %194 = vector.extract_strided_slice %6 {offsets = [0, 11], sizes = [2, 1], strides = [1, 1]} : vector<2x16xf32> to vector<2x1xf32>
    %195 = vector.extract_strided_slice %125 {offsets = [11, 0], sizes = [1, 128], strides = [1, 1]} : vector<16x128xf32> to vector<1x128xf32>
    %196 = vector.broadcast %194 : vector<2x1xf32> to vector<2x128xf32>
    %197 = vector.broadcast %195 : vector<1x128xf32> to vector<2x128xf32>
    %198 = arith.mulf %196, %197 : vector<2x128xf32>
    %199 = arith.addf %193, %198 : vector<2x128xf32>
    %200 = vector.extract_strided_slice %6 {offsets = [0, 12], sizes = [2, 1], strides = [1, 1]} : vector<2x16xf32> to vector<2x1xf32>
    %201 = vector.extract_strided_slice %125 {offsets = [12, 0], sizes = [1, 128], strides = [1, 1]} : vector<16x128xf32> to vector<1x128xf32>
    %202 = vector.broadcast %200 : vector<2x1xf32> to vector<2x128xf32>
    %203 = vector.broadcast %201 : vector<1x128xf32> to vector<2x128xf32>
    %204 = arith.mulf %202, %203 : vector<2x128xf32>
    %205 = arith.addf %199, %204 : vector<2x128xf32>
    %206 = vector.extract_strided_slice %6 {offsets = [0, 13], sizes = [2, 1], strides = [1, 1]} : vector<2x16xf32> to vector<2x1xf32>
    %207 = vector.extract_strided_slice %125 {offsets = [13, 0], sizes = [1, 128], strides = [1, 1]} : vector<16x128xf32> to vector<1x128xf32>
    %208 = vector.broadcast %206 : vector<2x1xf32> to vector<2x128xf32>
    %209 = vector.broadcast %207 : vector<1x128xf32> to vector<2x128xf32>
    %210 = arith.mulf %208, %209 : vector<2x128xf32>
    %211 = arith.addf %205, %210 : vector<2x128xf32>
    %212 = vector.extract_strided_slice %6 {offsets = [0, 14], sizes = [2, 1], strides = [1, 1]} : vector<2x16xf32> to vector<2x1xf32>
    %213 = vector.extract_strided_slice %125 {offsets = [14, 0], sizes = [1, 128], strides = [1, 1]} : vector<16x128xf32> to vector<1x128xf32>
    %214 = vector.broadcast %212 : vector<2x1xf32> to vector<2x128xf32>
    %215 = vector.broadcast %213 : vector<1x128xf32> to vector<2x128xf32>
    %216 = arith.mulf %214, %215 : vector<2x128xf32>
    %217 = arith.addf %211, %216 : vector<2x128xf32>
    %218 = vector.extract_strided_slice %6 {offsets = [0, 15], sizes = [2, 1], strides = [1, 1]} : vector<2x16xf32> to vector<2x1xf32>
    %219 = vector.extract_strided_slice %125 {offsets = [15, 0], sizes = [1, 128], strides = [1, 1]} : vector<16x128xf32> to vector<1x128xf32>
    %220 = vector.broadcast %218 : vector<2x1xf32> to vector<2x128xf32>
    %221 = vector.broadcast %219 : vector<1x128xf32> to vector<2x128xf32>
    %222 = arith.mulf %220, %221 : vector<2x128xf32>
    %223 = arith.addf %217, %222 : vector<2x128xf32>
    %c0_4 = arith.constant 0 : index
    %c0_5 = arith.constant 0 : index
    %224 = vector.load %arg3[%c0_4, %c0_5] : memref<2x128xf32, #tpu.memory_space<vmem>>, vector<2x128xf32>
    tpu.vector_store %arg3[%c0_4, %c0_5], %223 {strides = array<i32>} : memref<2x128xf32, #tpu.memory_space<vmem>>, vector<2x128xf32>,
    return
  }
  func.func @transform_0(%arg0: i32) -> (i32, i32) {
    %c0_i32 = arith.constant 0 : i32
    %c0_i32_0 = arith.constant 0 : i32
    %c0_i32_1 = arith.constant 0 : i32
    return %c0_i32, %c0_i32_0 : i32, i32
  }
  func.func @transform_1(%arg0: i32) -> (i32, i32) {
    %c0_i32 = arith.constant 0 : i32
    %c0_i32_0 = arith.constant 0 : i32
    return %c0_i32, %arg0 : i32, i32
  }
  func.func @transform_2(%arg0: i32) -> (i32, i32) {
    %c0_i32 = arith.constant 0 : i32
    %c0_i32_0 = arith.constant 0 : i32
    return %c0_i32, %arg0 : i32, i32
  }
}

</mosaic_0001>

<llo_original>
// kernel: tpu_custom_call.1
$region0: #{tpu_custom_call.1}
  #allocation0 [shape = 'u32[]', space=smem, size = 0x4, offset = 0x4, fixed_abs, tag = 'smem constant byte address 0x4 - core index']
  #allocation1 [shape = 'u32[72,128]{1,0:T(1,128)}', space=vmem, size = 0x9000, scoped, tag = 'internal scratch']
  %s0 = inlined_call_operand.hbm [shape: f32[16,37], index: 0, kind: input, shape index: {}]
  %s1 = inlined_call_operand.hbm [shape: f32[2,128], index: 1, kind: input, shape index: {}]
  %s2 = inlined_call_operand.hbm [shape: f32[2,128], index: 2, kind: output, shape index: {}]
  %s3 = sld [smem:[#allocation0]]
  $region26: #{tpu_custom_call.1} parent=0
    _
  %s5 = ssub.s32 1, %s3
  %s6 = scalar_select 0, %s5, %s3
  $region1: #{tpu_custom_call.1} parent=0
    #allocation2 [shape = 'u8[8192]{0}', space=vmem, size = 0x2000, scoped, tag = 'input window, operand 0, single buffered']
    #allocation3 [shape = 's32[1]{0}', space=sflag, size = 0x4, scoped, tag = 'scoped memory for tpu_custom_call.1']
    #allocation4 [shape = 's32[1]{0}', space=sflag, size = 0x4, scoped, tag = 'scoped memory for tpu_custom_call.1']
    #allocation5 [shape = 'u8[1024]{0}', space=vmem, size = 0x400, scoped, tag = 'input window, operand 1, single buffered']
    #allocation6 [shape = 's32[1]{0}', space=sflag, size = 0x4, scoped, tag = 'scoped memory for tpu_custom_call.1']
    #allocation7 [shape = 'u8[1024]{0}', space=vmem, size = 0x400, scoped, tag = 'output window, operand 0, single buffered']
    %7 = vsyncpa [#allocation3], 0
    %8 = vsyncpa [#allocation6], 0
    %9 = vsyncpa [#allocation4], 0
    // Predicated region
    $region2: #{tpu_custom_call.1} parent=1 // pred_check
      _
    $region3: #{tpu_custom_call.1} parent=1 // pred_check_branch
      %11 = sbr.rel (0) target = $region5
    $region4: #{tpu_custom_call.1} parent=1 // pred_region
      %13 = vsyncadd [#allocation3], 0
      %s14 = sshll.u32 %s0, 4
      %s15 = int_to_ptr.hbm [resolvable:$true] %s14
      %s16 = sshll.u32 [#allocation2], 4
      %s17 = int_to_ptr.vmem [resolvable:$true] %s16
      %22 = dma.hbm_to_vmem [thread:$0]  %s15, 256, %s17, [#allocation3], 128, 128, 8
    $region5: #{tpu_custom_call.1} parent=1 // pred_fallthru
      _
    // Predicated region
    $region6: #{tpu_custom_call.1} parent=1 // pred_check
      _
    $region7: #{tpu_custom_call.1} parent=1 // pred_check_branch
      %24 = sbr.rel (0) target = $region9
    $region8: #{tpu_custom_call.1} parent=1 // pred_region
      %26 = vsyncadd [#allocation6], 0
      %s28 = sshll.u32 %s1, 4
      %s29 = int_to_ptr.hbm [resolvable:$true] %s28
      %s30 = sshll.u32 [#allocation5], 4
      %s31 = int_to_ptr.vmem [resolvable:$true] %s30
      %33 = dma.hbm_to_vmem [thread:$0]  %s29, 32, %s31, [#allocation6]
    $region9: #{tpu_custom_call.1} parent=1 // pred_fallthru
      _
    // Predicated region
    $region10: #{tpu_custom_call.1} parent=1 // pred_check
      _
    $region11: #{tpu_custom_call.1} parent=1 // pred_check_branch
      %35 = sbr.rel (0) target = $region13
    $region12: #{tpu_custom_call.1} parent=1 // pred_region
      %37 = dma.done [#allocation3], 256
    $region13: #{tpu_custom_call.1} parent=1 // pred_fallthru
      _
    // Predicated region
    $region14: #{tpu_custom_call.1} parent=1 // pred_check
      _
    $region15: #{tpu_custom_call.1} parent=1 // pred_check_branch
      %39 = sbr.rel (0) target = $region17
    $region16: #{tpu_custom_call.1} parent=1 // pred_region
      %41 = dma.done [#allocation6], 32
    $region17: #{tpu_custom_call.1} parent=1 // pred_fallthru
      _
    %v42 = vld [vmem:[#allocation2] sm:$0xff]
    %v43 = vld [vmem:[#allocation2 + $0x8] sm:$0xff]
    %v44 = vld [vmem:[#allocation5] sm:$0x3]
    %46 = vset.pattern.permute.xlu0 2
    %47 = vperm.xlu0 %46, %v42
    %v48 = vpop.permute.xlu0 %47
    %51 = vset.pattern.permute.xlu0 2
    %52 = vperm.xlu0 %51, %v43
    %v53 = vpop.permute.xlu0 %52
    %55 = vset.pattern.permute.xlu0 0
    %56 = vperm.xlu0 %55, %v42
    %v57 = vpop.permute.xlu0 %56
    %59 = vset.pattern.permute.xlu0 0
    %60 = vperm.xlu0 %59, %v43
    %v61 = vpop.permute.xlu0 %60
    %v63 = vperm.slane %v44, 0
    %v64 = vmul.f32 %v57, %v63
    %v65 = vmul.f32 %v61, %v63
    %v66 = vadd.f32 %v48, %v64
    %v67 = vadd.f32 %v53, %v65
    %68 = vset.pattern.permute.xlu0 1
    %69 = vperm.xlu0 %68, %v42
    %v70 = vpop.permute.xlu0 %69
    %72 = vset.pattern.permute.xlu0 1
    %73 = vperm.xlu0 %72, %v43
    %v74 = vpop.permute.xlu0 %73
    %v76 = vperm.slane %v44, 1
    %v77 = vmul.f32 %v70, %v76
    %v78 = vmul.f32 %v74, %v76
    %v79 = vadd.f32 %v66, %v77
    %v80 = vadd.f32 %v67, %v78
    %v81 = vmul.f32 %v79, 0.2
    %v82 = vmul.f32 %v80, 0.2
    %v83 = vmax.f32 %v79, %v81
    %v84 = vmax.f32 %v80, %v82
    %85 = vset.pattern.permute.xlu0 19
    %86 = vperm.xlu0 %85, %v42
    %v87 = vpop.permute.xlu0 %86
    %89 = vset.pattern.permute.xlu0 19
    %90 = vperm.xlu0 %89, %v43
    %v91 = vpop.permute.xlu0 %90
    %93 = vset.pattern.permute.xlu0 3
    %94 = vperm.xlu0 %93, %v42
    %v95 = vpop.permute.xlu0 %94
    %97 = vset.pattern.permute.xlu0 3
    %98 = vperm.xlu0 %97, %v43
    %v99 = vpop.permute.xlu0 %98
    %v101 = vperm.slane %v83, 0
    %v102 = vmul.f32 %v95, %v101
    %v103 = vmul.f32 %v99, %v101
    %v104 = vadd.f32 %v87, %v102
    %v105 = vadd.f32 %v91, %v103
    %106 = vset.pattern.permute.xlu0 4
    %107 = vperm.xlu0 %106, %v42
    %v108 = vpop.permute.xlu0 %107
    %110 = vset.pattern.permute.xlu0 4
    %111 = vperm.xlu0 %110, %v43
    %v112 = vpop.permute.xlu0 %111
    %v114 = vperm.slane %v83, 1
    %v115 = vmul.f32 %v108, %v114
    %v116 = vmul.f32 %v112, %v114
    %v117 = vadd.f32 %v104, %v115
    %v118 = vadd.f32 %v105, %v116
    %119 = vset.pattern.permute.xlu0 5
    %120 = vperm.xlu0 %119, %v42
    %v121 = vpop.permute.xlu0 %120
    %123 = vset.pattern.permute.xlu0 5
    %124 = vperm.xlu0 %123, %v43
    %v125 = vpop.permute.xlu0 %124
    %v127 = vperm.slane %v83, 2
    %v128 = vmul.f32 %v121, %v127
    %v129 = vmul.f32 %v125, %v127
    %v130 = vadd.f32 %v117, %v128
    %v131 = vadd.f32 %v118, %v129
    %132 = vset.pattern.permute.xlu0 6
    %133 = vperm.xlu0 %132, %v42
    %v134 = vpop.permute.xlu0 %133
    %136 = vset.pattern.permute.xlu0 6
    %137 = vperm.xlu0 %136, %v43
    %v138 = vpop.permute.xlu0 %137
    %v140 = vperm.slane %v83, 3
    %v141 = vmul.f32 %v134, %v140
    %v142 = vmul.f32 %v138, %v140
    %v143 = vadd.f32 %v130, %v141
    %v144 = vadd.f32 %v131, %v142
    %145 = vset.pattern.permute.xlu0 7
    %146 = vperm.xlu0 %145, %v42
    %v147 = vpop.permute.xlu0 %146
    %149 = vset.pattern.permute.xlu0 7
    %150 = vperm.xlu0 %149, %v43
    %v151 = vpop.permute.xlu0 %150
    %v153 = vperm.slane %v83, 4
    %v154 = vmul.f32 %v147, %v153
    %v155 = vmul.f32 %v151, %v153
    %v156 = vadd.f32 %v143, %v154
    %v157 = vadd.f32 %v144, %v155
    %158 = vset.pattern.permute.xlu0 8
    %159 = vperm.xlu0 %158, %v42
    %v160 = vpop.permute.xlu0 %159
    %162 = vset.pattern.permute.xlu0 8
    %163 = vperm.xlu0 %162, %v43
    %v164 = vpop.permute.xlu0 %163
    %v166 = vperm.slane %v83, 5
    %v167 = vmul.f32 %v160, %v166
    %v168 = vmul.f32 %v164, %v166
    %v169 = vadd.f32 %v156, %v167
    %v170 = vadd.f32 %v157, %v168
    %171 = vset.pattern.permute.xlu0 9
    %172 = vperm.xlu0 %171, %v42
    %v173 = vpop.permute.xlu0 %172
    %175 = vset.pattern.permute.xlu0 9
    %176 = vperm.xlu0 %175, %v43
    %v177 = vpop.permute.xlu0 %176
    %v179 = vperm.slane %v83, 6
    %v180 = vmul.f32 %v173, %v179
    %v181 = vmul.f32 %v177, %v179
    %v182 = vadd.f32 %v169, %v180
    %v183 = vadd.f32 %v170, %v181
    %184 = vset.pattern.permute.xlu0 10
    %185 = vperm.xlu0 %184, %v42
    %v186 = vpop.permute.xlu0 %185
    %188 = vset.pattern.permute.xlu0 10
    %189 = vperm.xlu0 %188, %v43
    %v190 = vpop.permute.xlu0 %189
    %v192 = vperm.slane %v83, 7
    %v193 = vmul.f32 %v186, %v192
    %v194 = vmul.f32 %v190, %v192
    %v195 = vadd.f32 %v182, %v193
    %v196 = vadd.f32 %v183, %v194
    %197 = vset.pattern.permute.xlu0 11
    %198 = vperm.xlu0 %197, %v42
    %v199 = vpop.permute.xlu0 %198
    %201 = vset.pattern.permute.xlu0 11
    %202 = vperm.xlu0 %201, %v43
    %v203 = vpop.permute.xlu0 %202
    %v205 = vperm.slane %v84, 0
    %v206 = vmul.f32 %v199, %v205
    %v207 = vmul.f32 %v203, %v205
    %v208 = vadd.f32 %v195, %v206
    %v209 = vadd.f32 %v196, %v207
    %210 = vset.pattern.permute.xlu0 12
    %211 = vperm.xlu0 %210, %v42
    %v212 = vpop.permute.xlu0 %211
    %214 = vset.pattern.permute.xlu0 12
    %215 = vperm.xlu0 %214, %v43
    %v216 = vpop.permute.xlu0 %215
    %v218 = vperm.slane %v84, 1
    %v219 = vmul.f32 %v212, %v218
    %v220 = vmul.f32 %v216, %v218
    %v221 = vadd.f32 %v208, %v219
    %v222 = vadd.f32 %v209, %v220
    %223 = vset.pattern.permute.xlu0 13
    %224 = vperm.xlu0 %223, %v42
    %v225 = vpop.permute.xlu0 %224
    %227 = vset.pattern.permute.xlu0 13
    %228 = vperm.xlu0 %227, %v43
    %v229 = vpop.permute.xlu0 %228
    %v231 = vperm.slane %v84, 2
    %v232 = vmul.f32 %v225, %v231
    %v233 = vmul.f32 %v229, %v231
    %v234 = vadd.f32 %v221, %v232
    %v235 = vadd.f32 %v222, %v233
    %236 = vset.pattern.permute.xlu0 14
    %237 = vperm.xlu0 %236, %v42
    %v238 = vpop.permute.xlu0 %237
    %240 = vset.pattern.permute.xlu0 14
    %241 = vperm.xlu0 %240, %v43
    %v242 = vpop.permute.xlu0 %241
    %v244 = vperm.slane %v84, 3
    %v245 = vmul.f32 %v238, %v244
    %v246 = vmul.f32 %v242, %v244
    %v247 = vadd.f32 %v234, %v245
    %v248 = vadd.f32 %v235, %v246
    %249 = vset.pattern.permute.xlu0 15
    %250 = vperm.xlu0 %249, %v42
    %v251 = vpop.permute.xlu0 %250
    %253 = vset.pattern.permute.xlu0 15
    %254 = vperm.xlu0 %253, %v43
    %v255 = vpop.permute.xlu0 %254
    %v257 = vperm.slane %v84, 4
    %v258 = vmul.f32 %v251, %v257
    %v259 = vmul.f32 %v255, %v257
    %v260 = vadd.f32 %v247, %v258
    %v261 = vadd.f32 %v248, %v259
    %262 = vset.pattern.permute.xlu0 16
    %263 = vperm.xlu0 %262, %v42
    %v264 = vpop.permute.xlu0 %263
    %266 = vset.pattern.permute.xlu0 16
    %267 = vperm.xlu0 %266, %v43
    %v268 = vpop.permute.xlu0 %267
    %v270 = vperm.slane %v84, 5
    %v271 = vmul.f32 %v264, %v270
    %v272 = vmul.f32 %v268, %v270
    %v273 = vadd.f32 %v260, %v271
    %v274 = vadd.f32 %v261, %v272
    %275 = vset.pattern.permute.xlu0 17
    %276 = vperm.xlu0 %275, %v42
    %v277 = vpop.permute.xlu0 %276
    %279 = vset.pattern.permute.xlu0 17
    %280 = vperm.xlu0 %279, %v43
    %v281 = vpop.permute.xlu0 %280
    %v283 = vperm.slane %v84, 6
    %v284 = vmul.f32 %v277, %v283
    %v285 = vmul.f32 %v281, %v283
    %v286 = vadd.f32 %v273, %v284
    %v287 = vadd.f32 %v274, %v285
    %288 = vset.pattern.permute.xlu0 18
    %289 = vperm.xlu0 %288, %v42
    %v290 = vpop.permute.xlu0 %289
    %292 = vset.pattern.permute.xlu0 18
    %293 = vperm.xlu0 %292, %v43
    %v294 = vpop.permute.xlu0 %293
    %v296 = vperm.slane %v84, 7
    %v297 = vmul.f32 %v290, %v296
    %v298 = vmul.f32 %v294, %v296
    %v299 = vadd.f32 %v286, %v297
    %v300 = vadd.f32 %v287, %v298
    %v301 = vmul.f32 %v299, 0.2
    %v302 = vmul.f32 %v300, 0.2
    %v303 = vmax.f32 %v299, %v301
    %v304 = vmax.f32 %v300, %v302
    %305 = vset.pattern.permute.xlu0 36
    %306 = vperm.xlu0 %305, %v42
    %v307 = vpop.permute.xlu0 %306
    %309 = vset.pattern.permute.xlu0 20
    %310 = vperm.xlu0 %309, %v42
    %v311 = vpop.permute.xlu0 %310
    %v313 = vperm.slane %v303, 0
    %v314 = vmul.f32 %v311, %v313
    %v315 = vadd.f32 %v307, %v314
    %316 = vset.pattern.permute.xlu0 21
    %317 = vperm.xlu0 %316, %v42
    %v318 = vpop.permute.xlu0 %317
    %v320 = vperm.slane %v303, 1
    %v321 = vmul.f32 %v318, %v320
    %v322 = vadd.f32 %v315, %v321
    %323 = vset.pattern.permute.xlu0 22
    %324 = vperm.xlu0 %323, %v42
    %v325 = vpop.permute.xlu0 %324
    %v327 = vperm.slane %v303, 2
    %v328 = vmul.f32 %v325, %v327
    %v329 = vadd.f32 %v322, %v328
    %330 = vset.pattern.permute.xlu0 23
    %331 = vperm.xlu0 %330, %v42
    %v332 = vpop.permute.xlu0 %331
    %v334 = vperm.slane %v303, 3
    %v335 = vmul.f32 %v332, %v334
    %v336 = vadd.f32 %v329, %v335
    %337 = vset.pattern.permute.xlu0 24
    %338 = vperm.xlu0 %337, %v42
    %v339 = vpop.permute.xlu0 %338
    %v341 = vperm.slane %v303, 4
    %v342 = vmul.f32 %v339, %v341
    %v343 = vadd.f32 %v336, %v342
    %344 = vset.pattern.permute.xlu0 25
    %345 = vperm.xlu0 %344, %v42
    %v346 = vpop.permute.xlu0 %345
    %v348 = vperm.slane %v303, 5
    %v349 = vmul.f32 %v346, %v348
    %v350 = vadd.f32 %v343, %v349
    %351 = vset.pattern.permute.xlu0 26
    %352 = vperm.xlu0 %351, %v42
    %v353 = vpop.permute.xlu0 %352
    %v355 = vperm.slane %v303, 6
    %v356 = vmul.f32 %v353, %v355
    %v357 = vadd.f32 %v350, %v356
    %358 = vset.pattern.permute.xlu0 27
    %359 = vperm.xlu0 %358, %v42
    %v360 = vpop.permute.xlu0 %359
    %v362 = vperm.slane %v303, 7
    %v363 = vmul.f32 %v360, %v362
    %v364 = vadd.f32 %v357, %v363
    %365 = vset.pattern.permute.xlu0 28
    %366 = vperm.xlu0 %365, %v42
    %v367 = vpop.permute.xlu0 %366
    %v369 = vperm.slane %v304, 0
    %v370 = vmul.f32 %v367, %v369
    %v371 = vadd.f32 %v364, %v370
    %372 = vset.pattern.permute.xlu0 29
    %373 = vperm.xlu0 %372, %v42
    %v374 = vpop.permute.xlu0 %373
    %v376 = vperm.slane %v304, 1
    %v377 = vmul.f32 %v374, %v376
    %v378 = vadd.f32 %v371, %v377
    %379 = vset.pattern.permute.xlu0 30
    %380 = vperm.xlu0 %379, %v42
    %v381 = vpop.permute.xlu0 %380
    %v383 = vperm.slane %v304, 2
    %v384 = vmul.f32 %v381, %v383
    %v385 = vadd.f32 %v378, %v384
    %386 = vset.pattern.permute.xlu0 31
    %387 = vperm.xlu0 %386, %v42
    %v388 = vpop.permute.xlu0 %387
    %v390 = vperm.slane %v304, 3
    %v391 = vmul.f32 %v388, %v390
    %v392 = vadd.f32 %v385, %v391
    %393 = vset.pattern.permute.xlu0 32
    %394 = vperm.xlu0 %393, %v42
    %v395 = vpop.permute.xlu0 %394
    %v397 = vperm.slane %v304, 4
    %v398 = vmul.f32 %v395, %v397
    %v399 = vadd.f32 %v392, %v398
    %400 = vset.pattern.permute.xlu0 33
    %401 = vperm.xlu0 %400, %v42
    %v402 = vpop.permute.xlu0 %401
    %v404 = vperm.slane %v304, 5
    %v405 = vmul.f32 %v402, %v404
    %v406 = vadd.f32 %v399, %v405
    %407 = vset.pattern.permute.xlu0 34
    %408 = vperm.xlu0 %407, %v42
    %v409 = vpop.permute.xlu0 %408
    %v411 = vperm.slane %v304, 6
    %v412 = vmul.f32 %v409, %v411
    %v413 = vadd.f32 %v406, %v412
    %414 = vset.pattern.permute.xlu0 35
    %415 = vperm.xlu0 %414, %v42
    %v416 = vpop.permute.xlu0 %415
    %v418 = vperm.slane %v304, 7
    %v419 = vmul.f32 %v416, %v418
    %v420 = vadd.f32 %v413, %v419
    %421 = vst [vmem:[#allocation7] sm:$0x3] %v420
    // Predicated region
    $region18: #{tpu_custom_call.1} parent=1 // pred_check
      _
    $region19: #{tpu_custom_call.1} parent=1 // pred_check_branch
      %423 = sbr.rel (0) target = $region21
    $region20: #{tpu_custom_call.1} parent=1 // pred_region
      %425 = vsyncadd [#allocation4], 0
      %s427 = sshll.u32 [#allocation7], 4
      %s428 = int_to_ptr.vmem [resolvable:$true] %s427
      %s429 = sshll.u32 %s2, 4
      %s430 = int_to_ptr.hbm [resolvable:$true] %s429
      %432 = dma.vmem_to_hbm [thread:$0]  %s428, 32, %s430, [#allocation4]
    $region21: #{tpu_custom_call.1} parent=1 // pred_fallthru
      _
    // Predicated region
    $region22: #{tpu_custom_call.1} parent=1 // pred_check
      _
    $region23: #{tpu_custom_call.1} parent=1 // pred_check_branch
      %434 = sbr.rel (0) target = $region25
    $region24: #{tpu_custom_call.1} parent=1 // pred_region
      %436 = dma.done [#allocation4], 32
    $region25: #{tpu_custom_call.1} parent=1 // pred_fallthru
      _
    %437 = vsyncpa [#allocation3], 1
    %438 = vsyncpa [#allocation6], 1
    %439 = vsyncpa [#allocation4], 1

</llo_original>
